<compile_context>
chip_gen: v5e
topology: v5e:2x2
jax: 0.10.0
libtpu: 0.0.40
codegen_flags: <defaults>
</compile_context>

<pallas_src>
import jax
import jax.numpy as jnp
from jax import lax
from jax.experimental import pallas as pl
from jax.experimental.pallas import tpu as pltpu


_N_INFLIGHT = 8                       # row DMAs kept in flight (HBM-gather path)
_VMEM_BUDGET = 24 * 1024 * 1024       # resident-path working-set budget (safe on v7x 64 MiB)
_MAX_ONEHOT_VOCAB = 8192              # beyond this the one-hot tile gets too wide
_VMEM_LIMIT = 48 * 1024 * 1024        # explicit scoped-VMEM limit (< v7x physical)


def _sublane(dtype):
    # rows per 32-bit sublane packing: 8 (f32), 16 (bf16), 32 (int8/fp8)
    return max(8, 32 // jnp.dtype(dtype).itemsize)


def _round_up(x, m):
    return (x + m - 1) // m * m


def _embed_onehot_kernel(ids_ref, w_ref, out_ref):
    """Gather TM rows from a VMEM-resident table via a one-hot MXU matmul."""
    tm = out_ref.shape[0]
    vocab = w_ref.shape[0]
    ids = ids_ref[...]                                           # (TM, 1) int32
    vocab_iota = lax.broadcasted_iota(jnp.int32, (tm, vocab), 1)
    one_hot = (vocab_iota == ids).astype(w_ref.dtype)            # (TM, vocab)
    out_ref[...] = jnp.dot(
        one_hot, w_ref[...], preferred_element_type=jnp.float32
    ).astype(out_ref.dtype)


def _embed_dma_kernel(ids_ref, w_hbm_ref, out_ref, sem_ref):
    """Gather TM rows from an HBM-resident table with windowed async DMAs."""
    tm = out_ref.shape[0]
    nwin = sem_ref.shape[0]
    base = pl.program_id(0) * tm

    def row_copy(t):
        row = ids_ref[base + t]
        return pltpu.make_async_copy(
            w_hbm_ref.at[pl.ds(row, 1), :],
            out_ref.at[pl.ds(t, 1), :],
            sem_ref.at[t % nwin],
        )

    # Prime the DMA window (static Python loop).
    for t in range(min(nwin, tm)):
        row_copy(t).start()

    def steady(t, carry):
        row_copy(t).wait()
        row_copy(t + nwin).start()
        return carry

    def drain(t, carry):
        row_copy(t).wait()
        return carry

    split = max(tm - nwin, 0)
    lax.fori_loop(0, split, steady, 0)
    lax.fori_loop(split, tm, drain, 0)


def embedding_lookup(ids, weight, *, force_hbm_gather=False):
    """Pallas equivalent of torch.nn.functional.embedding(ids, weight)."""
    orig_shape = ids.shape
    vocab_size, dim = weight.shape
    dtype = weight.dtype
    itemsize = jnp.dtype(dtype).itemsize

    flat_ids = ids.reshape(-1).astype(jnp.int32)
    # torch raises on out-of-range ids; clamp so the row fetch stays in bounds.
    flat_ids = jnp.clip(flat_ids, 0, vocab_size - 1)
    n_tokens = flat_ids.shape[0]

    # --- choose a lane/sublane-aligned token tile height TM ------------------
    sub = _sublane(dtype)
    tm = 256
    while tm > sub and tm * dim * itemsize > 4 * 1024 * 1024:
        tm //= 2
    tm = _round_up(max(tm, sub), sub)

    n_aligned = _round_up(max(n_tokens, 1), sub)
    tm = min(tm, n_aligned)
    n_pad = _round_up(n_aligned, tm)
    n_tiles = n_pad // tm

    if n_pad != n_tokens:
        flat_ids = jnp.pad(flat_ids, (0, n_pad - n_tokens))

    # --- path selection -------------------------------------------------------
    table_bytes = vocab_size * dim * itemsize
    onehot_bytes = tm * vocab_size * itemsize
    block_bytes = tm * dim * itemsize
    resident_ok = (
        not force_hbm_gather
        and vocab_size <= _MAX_ONEHOT_VOCAB
        and 2 * table_bytes + 2 * onehot_bytes + 4 * block_bytes <= _VMEM_BUDGET
    )

    if resident_ok:
        # Fast path: whole table resident in VMEM, gather via one-hot matmul.
        ids_col = flat_ids.reshape(n_pad, 1)
        grid_spec = pltpu.PrefetchScalarGridSpec(
            num_scalar_prefetch=0,
            grid=(n_tiles,),
            in_specs=[
                pl.BlockSpec((tm, 1), lambda i: (i, 0)),            # token ids
                pl.BlockSpec((vocab_size, dim), lambda i: (0, 0)),  # full table, resident
            ],
            out_specs=pl.BlockSpec((tm, dim), lambda i: (i, 0)),
        )
        out = pl.pallas_call(
            _embed_onehot_kernel,
            out_shape=jax.ShapeDtypeStruct((n_pad, dim), dtype),
            grid_spec=grid_spec,
            compiler_params=pltpu.CompilerParams(
                dimension_semantics=("parallel",),
                vmem_limit_bytes=_VMEM_LIMIT,
            ),
            cost_estimate=pl.CostEstimate(
                flops=2 * n_pad * vocab_size * dim,
                transcendentals=0,
                bytes_accessed=table_bytes + n_pad * 4 + n_pad * dim * itemsize,
            ),
        )(ids_col, weight)
    else:
        # General path: table stays in HBM; gather rows with manual DMAs.
        grid_spec = pltpu.PrefetchScalarGridSpec(
            num_scalar_prefetch=1,                       # ids land in SMEM
            grid=(n_tiles,),
            in_specs=[pl.BlockSpec(memory_space=pl.ANY)],  # raw HBM weight ref
            out_specs=pl.BlockSpec((tm, dim), lambda i, ids: (i, 0)),
            scratch_shapes=[pltpu.SemaphoreType.DMA((_N_INFLIGHT,))],
        )
        out = pl.pallas_call(
            _embed_dma_kernel,
            out_shape=jax.ShapeDtypeStruct((n_pad, dim), dtype),
            grid_spec=grid_spec,
            compiler_params=pltpu.CompilerParams(
                dimension_semantics=("parallel",),
                vmem_limit_bytes=_VMEM_LIMIT,
            ),
            cost_estimate=pl.CostEstimate(
                flops=0,
                transcendentals=0,
                bytes_accessed=2 * n_pad * dim * itemsize + n_pad * 4,
            ),
        )(flat_ids, weight)

    out = out[:n_tokens]
    return out.reshape(*orig_shape, dim)


if __name__ == "__main__":
    # Small, module-consistent shapes: vocab=64, dim=128, batch=2, seq=8.
    vocab_size = 64
    dim = 128
    batch, seq = 2, 8

    key = jax.random.PRNGKey(0)
    k_w, k_ids = jax.random.split(key)

    weight = jax.random.normal(k_w, (vocab_size, dim), dtype=jnp.float32)
    ids = jax.random.randint(k_ids, (batch, seq), 0, vocab_size, dtype=jnp.int32)

    ref = weight[ids]  # plain JAX gather == F.embedding semantics

    # Fast path: VMEM-resident table + one-hot MXU matmul.
    out = jax.block_until_ready(embedding_lookup(ids, weight))
    assert out.shape == (batch, seq, dim), out.shape
    assert jnp.allclose(out, ref), "resident-path mismatch vs reference gather"

    # General path: HBM-resident table + windowed per-row DMA gather.
    out_dma = jax.block_until_ready(
        embedding_lookup(ids, weight, force_hbm_gather=True))
    assert out_dma.shape == (batch, seq, dim), out_dma.shape
    assert jnp.allclose(out_dma, ref), "hbm-gather-path mismatch vs reference gather"

    print("KERNEL_OK")
</pallas_src>

<mosaic_0001>
module attributes {stable_mosaic.version = 11 : i64} {
  func.func @_embed_onehot_kernel(%arg0: i32, %arg1: memref<16x1xi32, #tpu.memory_space<vmem>>, %arg2: memref<64x128xf32, #tpu.memory_space<vmem>>, %arg3: memref<16x128xf32, #tpu.memory_space<vmem>>) attributes {dimension_semantics = [#tpu.dimension_semantics<parallel>], iteration_bounds = array<i64: 1>, scalar_prefetch = 0 : i64, scratch_operands = 0 : i64, tpu.core_type = #tpu.core_type<tc>, window_params = [{transform_indices = @transform_0, window_bounds = array<i64: 16, 1>}, {pipeline_mode = #tpu.pipeline_mode<synchronous>, transform_indices = @transform_1, window_bounds = array<i64: 64, 128>}, {transform_indices = @transform_2, window_bounds = array<i64: 16, 128>}]} {
    %c0 = arith.constant 0 : index
    %c0_0 = arith.constant 0 : index
    %0 = vector.load %arg1[%c0, %c0_0] : memref<16x1xi32, #tpu.memory_space<vmem>>, vector<16x1xi32>
    %1 = tpu.iota {dimensions = array<i32: 1>} : vector<16x64xi32>
    %2 = vector.broadcast %0 : vector<16x1xi32> to vector<16x64xi32>
    %3 = arith.cmpi eq, %1, %2 : vector<16x64xi32>
    %4 = arith.extui %3 : vector<16x64xi1> to vector<16x64xi32>
    %5 = arith.sitofp %4 : vector<16x64xi32> to vector<16x64xf32>
    %c0_1 = arith.constant 0 : index
    %c0_2 = arith.constant 0 : index
    %6 = vector.load %arg2[%c0_1, %c0_2] : memref<64x128xf32, #tpu.memory_space<vmem>>, vector<64x128xf32>
    %cst = arith.constant dense<0.000000e+00> : vector<16x128xf32>
    %7 = tpu.matmul %5, %6, %cst {dimension_numbers = #tpu.dot_dimension_numbers<[1], [0], [0], [1], [0, 0, 1, 1], [], []>} : vector<16x64xf32>, vector<64x128xf32>, vector<16x128xf32> -> vector<16x128xf32>
    %c0_3 = arith.constant 0 : index
    %c0_4 = arith.constant 0 : index
    %8 = vector.load %arg3[%c0_3, %c0_4] : memref<16x128xf32, #tpu.memory_space<vmem>>, vector<16x128xf32>
    tpu.vector_store %arg3[%c0_3, %c0_4], %7 {strides = array<i32>} : memref<16x128xf32, #tpu.memory_space<vmem>>, vector<16x128xf32>,
    return
  }
  func.func @transform_0(%arg0: i32) -> (i32, i32) {
    %c0_i32 = arith.constant 0 : i32
    %c0_i32_0 = arith.constant 0 : i32
    return %arg0, %c0_i32 : i32, i32
  }
  func.func @transform_1(%arg0: i32) -> (i32, i32) {
    %c0_i32 = arith.constant 0 : i32
    %c0_i32_0 = arith.constant 0 : i32
    %c0_i32_1 = arith.constant 0 : i32
    return %c0_i32, %c0_i32_0 : i32, i32
  }
  func.func @transform_2(%arg0: i32) -> (i32, i32) {
    %c0_i32 = arith.constant 0 : i32
    %c0_i32_0 = arith.constant 0 : i32
    return %arg0, %c0_i32 : i32, i32
  }
}

</mosaic_0001>

<llo_original>
// kernel: tpu_custom_call.1
$region0: #{tpu_custom_call.1}
  #allocation0 [shape = 'u32[]', space=smem, size = 0x4, offset = 0x4, fixed_abs, tag = 'smem constant byte address 0x4 - core index']
  #allocation1 [shape = 'u32[72,128]{1,0:T(1,128)}', space=vmem, size = 0x9000, scoped, tag = 'internal scratch']
  %s0 = inlined_call_operand.vmem [shape: s32[16,1], index: 0, kind: input, shape index: {}]
  %s1 = inlined_call_operand.hbm [shape: f32[64,128], index: 1, kind: input, shape index: {}]
  %s2 = inlined_call_operand.hbm [shape: f32[16,128], index: 2, kind: output, shape index: {}]
  %s3 = sld [smem:[#allocation0]]
  $region22: #{tpu_custom_call.1} parent=0
    _
  %s5 = ssub.s32 1, %s3
  %s6 = scalar_select 0, %s5, %s3
  $region1: #{tpu_custom_call.1} parent=0
    #allocation2 [shape = 'u8[32768]{0}', space=vmem, size = 0x8000, scoped, tag = 'input window, operand 1, single buffered']
    #allocation3 [shape = 's32[1]{0}', space=sflag, size = 0x4, scoped, tag = 'scoped memory for tpu_custom_call.1']
    #allocation4 [shape = 's32[1]{0}', space=sflag, size = 0x4, scoped, tag = 'scoped memory for tpu_custom_call.1']
    #allocation5 [shape = 'u8[8192]{0}', space=vmem, size = 0x2000, scoped, tag = 'output window, operand 0, single buffered']
    %7 = vsyncpa [#allocation3], 0
    %8 = vsyncpa [#allocation4], 0
    // Predicated region
    $region2: #{tpu_custom_call.1} parent=1 // pred_check
      _
    $region3: #{tpu_custom_call.1} parent=1 // pred_check_branch
      %10 = sbr.rel (0) target = $region5
    $region4: #{tpu_custom_call.1} parent=1 // pred_region
      _
    $region5: #{tpu_custom_call.1} parent=1 // pred_fallthru
      _
    // Predicated region
    $region6: #{tpu_custom_call.1} parent=1 // pred_check
      _
    $region7: #{tpu_custom_call.1} parent=1 // pred_check_branch
      %12 = sbr.rel (0) target = $region9
    $region8: #{tpu_custom_call.1} parent=1 // pred_region
      %14 = vsyncadd [#allocation3], 0
      %s15 = sshll.u32 %s1, 4
      %s16 = int_to_ptr.hbm [resolvable:$true] %s15
      %s17 = sshll.u32 [#allocation2], 4
      %s18 = int_to_ptr.vmem [resolvable:$true] %s17
      %23 = dma.hbm_to_vmem [thread:$0]  %s16, 1024, %s18, [#allocation3], 128, 128, 8
    $region9: #{tpu_custom_call.1} parent=1 // pred_fallthru
      _
    // Predicated region
    $region10: #{tpu_custom_call.1} parent=1 // pred_check
      _
    $region11: #{tpu_custom_call.1} parent=1 // pred_check_branch
      %25 = sbr.rel (0) target = $region13
    $region12: #{tpu_custom_call.1} parent=1 // pred_region
      %27 = dma.done [#allocation3], 1024
    $region13: #{tpu_custom_call.1} parent=1 // pred_fallthru
      _
    %v28 = vld [vmem:[%s0] sm:$0xff]
    %v29 = vld [vmem:[%s0 + $0x8] sm:$0xff]
    %v30 = vlaneseq
    %v31 = vand.u32 %v30, 127
    %32 = vset.pattern.permute.xlu0 0
    %33 = vperm.xlu0 %32, %v28
    %v34 = vpop.permute.xlu0 %33
    %35 = vset.pattern.permute.xlu0 0
    %36 = vperm.xlu0 %35, %v29
    %v37 = vpop.permute.xlu0 %36
    %vm38 = vcmp.eq.s32.totalorder %v31, %v34
    %vm39 = vcmp.eq.s32.totalorder %v31, %v37
    %v40 = vsel %vm38, 1, 0
    %v41 = vsel %vm39, 1, 0
    %v42 = vcvt.s32.f32 %v40
    %v43 = vcvt.s32.f32 %v41
    %v44 = vld [vmem:[#allocation2] sm:$0xff]
    %v45 = vld [vmem:[#allocation2 + $0x8] sm:$0xff]
    %v46 = vld [vmem:[#allocation2 + $0x10] sm:$0xff]
    %v47 = vld [vmem:[#allocation2 + $0x18] sm:$0xff]
    %v48 = vld [vmem:[#allocation2 + $0x20] sm:$0xff]
    %v49 = vld [vmem:[#allocation2 + $0x28] sm:$0xff]
    %v50 = vld [vmem:[#allocation2 + $0x30] sm:$0xff]
    %v51 = vld [vmem:[#allocation2 + $0x38] sm:$0xff]
    %vm52 = vcmask 523264
    %v54 = vsel %vm52, %v42, 0
    %v57 = vsel %vm52, %v43, 0
    %59 = vmatpush.msra.mxu0 0.0
    %60 = vmatpush.msra.mxu0 0.0
    %61 = vmatpush.msra.mxu0 0.0
    %62 = vmatpush.msra.mxu0 0.0
    %63 = vmatpush.msra.mxu0 0.0
    %64 = vmatpush.msra.mxu0 0.0
    %65 = vmatpush.msra.mxu0 0.0
    %66 = vmatpush.msra.mxu0 0.0
    %67 = vmatpush.msra.mxu0 %v51
    %68 = vmatpush.msra.mxu0 %v50
    %69 = vmatpush.msra.mxu0 %v49
    %70 = vmatpush.msra.mxu0 %v48
    %71 = vmatpush.msra.mxu0 %v47
    %72 = vmatpush.msra.mxu0 %v46
    %73 = vmatpush.msra.mxu0 %v45
    %74 = vmatpush.msra.mxu0 %v44
    %75 = vmatmul.f32.gmra.mxu0 %v54
    %v76 = vpop.f32.mrf.mxu0
    %v77 = vadd.f32 0.0, %v76
    %78 = vmatmul.f32.gmra.mxu0 %v57
    %v79 = vpop.f32.mrf.mxu0
    %v80 = vadd.f32 0.0, %v79
    %81 = vdwg.mxu0
    %82 = vst [vmem:[#allocation5] sm:$0xff] %v77
    %83 = vst [vmem:[#allocation5 + $0x8] sm:$0xff] %v80
    // Predicated region
    $region14: #{tpu_custom_call.1} parent=1 // pred_check
      _
    $region15: #{tpu_custom_call.1} parent=1 // pred_check_branch
      %85 = sbr.rel (0) target = $region17
    $region16: #{tpu_custom_call.1} parent=1 // pred_region
      %87 = vsyncadd [#allocation4], 0
      %s88 = sshll.u32 [#allocation5], 4
      %s89 = int_to_ptr.vmem [resolvable:$true] %s88
      %s90 = sshll.u32 %s2, 4
      %s91 = int_to_ptr.hbm [resolvable:$true] %s90
      %96 = dma.vmem_to_hbm [thread:$0]  %s89, 256, %s91, [#allocation4], 128, 128, 8
    $region17: #{tpu_custom_call.1} parent=1 // pred_fallthru
      _
    // Predicated region
    $region18: #{tpu_custom_call.1} parent=1 // pred_check
      _
    $region19: #{tpu_custom_call.1} parent=1 // pred_check_branch
      %98 = sbr.rel (0) target = $region21
    $region20: #{tpu_custom_call.1} parent=1 // pred_region
      %100 = dma.done [#allocation4], 256
    $region21: #{tpu_custom_call.1} parent=1 // pred_fallthru
      _
    %101 = vsyncpa [#allocation3], 1
    %102 = vsyncpa [#allocation4], 1

</llo_original>
